<compile_context>
chip_gen: v6e
topology: v6e:2x2x1
jax: 0.10.0
libtpu: 0.0.40
codegen_flags: <defaults>
</compile_context>

<pallas_src>
import jax
import jax.numpy as jnp
from jax.experimental import pallas as pl
from jax.experimental.pallas import tpu as pltpu


def _normalize_kernel(x_ref, sb_ref, o_ref):
    # x_ref: (block_rows, block_lanes); sb_ref: (block_rows, 2) f32 = [scale, bias]
    sb = sb_ref[...]
    scale = sb[:, 0:1]
    bias = sb[:, 1:2]
    x = x_ref[...].astype(jnp.float32)
    o_ref[...] = (x * scale + bias).astype(o_ref.dtype)


# Aim for >= 8 row/lane blocks per TensorCore on large inputs so the pipeline
# has enough steps and both v7x cores get work (harmless on 1-TC v5e/v6e).
_NUM_CORES = 2
_MIN_BLOCKS_LARGE = 8 * _NUM_CORES
_LARGE_BYTES = 4 << 20  # below this, a 1-2 step grid is fine (overhead-dominated)


def _round_up(v, m):
    return -(-v // m) * m


def _choose_blocks(nc, hw, itemsize, target_bytes):
    """Pick (block_rows, block_lanes) targeting ~target_bytes per x/out block.

    Also keeps the full double-buffered pipeline (2x x + 2x out + 2x padded
    scale/bias) at roughly 4*target_bytes of VMEM.
    """
    sublane = {4: 8, 2: 16, 1: 32}.get(itemsize, 8)
    row_bytes = hw * itemsize
    total_bytes = nc * row_bytes
    # Per-row pipeline cost incl. the lane-padded (rows, 2) f32 scale/bias tile:
    # per row-per-buffer-pair = 4*row_bytes (x+out) + 2*512 (sb)  =>  use
    # row_cost = row_bytes + 256 against target so footprint <= 4*target.
    row_cost = row_bytes + 256

    if sublane * row_bytes <= target_bytes:
        # Row-block tiling: full lane width (HW), multiple rows per block.
        block_lanes = hw
        rows = max(sublane, (target_bytes // row_cost) // sublane * sublane)
        if total_bytes > _LARGE_BYTES:
            # Ensure enough grid steps for pipelining / megacore sharding.
            rows_cap = max(sublane, _round_up(pl.cdiv(nc, _MIN_BLOCKS_LARGE), sublane))
            rows = min(rows, rows_cap)
        block_rows = min(rows, nc)
    else:
        # Even one sublane group of rows exceeds the target: tile the lane
        # axis too (128-multiple lane blocks), one sublane group of rows.
        block_rows = min(sublane, nc)
        lanes = max(128, (target_bytes // (block_rows * itemsize)) // 128 * 128)
        if total_bytes > _LARGE_BYTES:
            lanes_cap = max(128, _round_up(pl.cdiv(hw, _MIN_BLOCKS_LARGE), 128))
            lanes = min(lanes, lanes_cap)
        block_lanes = min(lanes, hw)
    return block_rows, block_lanes


def normalize_layer(x, means, sds, *, target_block_bytes=8 << 20):
    """(x - means[c]) / sds[c] for NCHW x, matching NormalizeLayer.forward."""
    N, C, H, W = x.shape
    NC, HW = N * C, H * W
    itemsize = jnp.dtype(x.dtype).itemsize

    # Fold subtract/divide into an FMA.  Stats are recomputed in f32 on the
    # tiny (C,) vectors (the big tensor is untouched by the wrapper).
    scale = 1.0 / sds.astype(jnp.float32)          # (C,)
    bias = -means.astype(jnp.float32) * scale      # (C,)
    sb = jnp.tile(jnp.stack([scale, bias], axis=-1), (N, 1))  # (NC, 2) f32

    # Row = one (image, channel) plane; HW on the lane axis (no transpose).
    # TODO(synk): for HW not a multiple of 128 (e.g. 7x7/14x14 maps) a lane-pad
    # in the wrapper could avoid masked partial stores; ImageNet-style HW
    # (224^2, 256^2, ...) is already lane-dense so we keep the plain reshape.
    x2 = x.reshape(NC, HW)

    block_rows, block_lanes = _choose_blocks(NC, HW, itemsize, target_block_bytes)
    grid = (pl.cdiv(NC, block_rows), pl.cdiv(HW, block_lanes))

    # VMEM budget: 2x double-buffered x + 2x out + 2x scale/bias (padded to
    # 8 sublanes x 128 lanes of f32 in VMEM) + headroom.
    block_bytes = block_rows * block_lanes * itemsize
    sb_block_bytes = _round_up(block_rows, 8) * 128 * 4
    vmem_limit = 4 * block_bytes + 2 * sb_block_bytes + (4 << 20)
    vmem_limit = max(int(vmem_limit), 16 << 20)

    cost = pl.CostEstimate(
        flops=2 * NC * HW,
        transcendentals=0,
        bytes_accessed=2 * NC * HW * itemsize + NC * 2 * 4,
    )

    out2 = pl.pallas_call(
        _normalize_kernel,
        out_shape=jax.ShapeDtypeStruct((NC, HW), x.dtype),
        grid_spec=pltpu.PrefetchScalarGridSpec(
            num_scalar_prefetch=0,
            grid=grid,
            in_specs=[
                pl.BlockSpec((block_rows, block_lanes), lambda i, j: (i, j)),
                pl.BlockSpec((block_rows, 2), lambda i, j: (i, 0)),
            ],
            out_specs=pl.BlockSpec((block_rows, block_lanes), lambda i, j: (i, j)),
        ),
        compiler_params=pltpu.CompilerParams(
            dimension_semantics=("parallel", "parallel"),
            vmem_limit_bytes=int(vmem_limit),
        ),
        cost_estimate=cost,
    )(x2, sb)

    return out2.reshape(N, C, H, W)


if __name__ == "__main__":
    # Deterministic "dataset statistics" (module __init__ takes per-channel
    # means / sds of shape (C,)).
    N, C, H, W = 2, 4, 16, 16
    means = jnp.array([0.485, 0.456, 0.406, 0.5], dtype=jnp.float32)
    sds = jnp.array([0.229, 0.224, 0.225, 0.25], dtype=jnp.float32)

    key = jax.random.PRNGKey(0)
    x = jax.random.normal(key, (N, C, H, W), dtype=jnp.float32)

    out = jax.block_until_ready(jax.jit(normalize_layer)(x, means, sds))
    ref = (x - means[None, :, None, None]) / sds[None, :, None, None]
    assert out.shape == (N, C, H, W)
    assert jnp.allclose(out, ref, rtol=1e-5, atol=1e-5), "mismatch vs reference"

    # Edge-block check: NC not a multiple of block_rows and a multi-step grid
    # (small forced block), exercising the padded last row-block path.
    N2, C2, H2, W2 = 3, 3, 16, 16
    means2 = jnp.array([0.485, 0.456, 0.406], dtype=jnp.float32)
    sds2 = jnp.array([0.229, 0.224, 0.225], dtype=jnp.float32)
    x_small = jax.random.normal(jax.random.PRNGKey(0), (N2, C2, H2, W2), jnp.float32)
    small_fn = jax.jit(
        lambda a, m, s: normalize_layer(a, m, s, target_block_bytes=8 * H2 * W2 * 4)
    )
    out_small = jax.block_until_ready(small_fn(x_small, means2, sds2))
    ref_small = (x_small - means2[None, :, None, None]) / sds2[None, :, None, None]
    assert jnp.allclose(out_small, ref_small, rtol=1e-5, atol=1e-5), "edge-block mismatch"

    print("KERNEL_OK")
</pallas_src>

<mosaic_0001>
module attributes {stable_mosaic.version = 11 : i64} {
  func.func @_normalize_kernel(%arg0: i32, %arg1: i32, %arg2: memref<8x256xf32, #tpu.memory_space<vmem>>, %arg3: memref<8x2xf32, #tpu.memory_space<vmem>>, %arg4: memref<8x256xf32, #tpu.memory_space<vmem>>) attributes {dimension_semantics = [#tpu.dimension_semantics<parallel>, #tpu.dimension_semantics<parallel>], iteration_bounds = array<i64: 1, 1>, scalar_prefetch = 0 : i64, scratch_operands = 0 : i64, tpu.core_type = #tpu.core_type<tc>, window_params = [{transform_indices = @transform_0, window_bounds = array<i64: 8, 256>}, {transform_indices = @transform_1, window_bounds = array<i64: 8, 2>}, {transform_indices = @transform_2, window_bounds = array<i64: 8, 256>}]} {
    %c0 = arith.constant 0 : index
    %c0_0 = arith.constant 0 : index
    %0 = vector.load %arg3[%c0, %c0_0] : memref<8x2xf32, #tpu.memory_space<vmem>>, vector<8x2xf32>
    %1 = vector.extract_strided_slice %0 {offsets = [0, 0], sizes = [8, 1], strides = [1, 1]} : vector<8x2xf32> to vector<8x1xf32>
    %2 = vector.extract_strided_slice %0 {offsets = [0, 1], sizes = [8, 1], strides = [1, 1]} : vector<8x2xf32> to vector<8x1xf32>
    %c0_1 = arith.constant 0 : index
    %c0_2 = arith.constant 0 : index
    %3 = vector.load %arg2[%c0_1, %c0_2] : memref<8x256xf32, #tpu.memory_space<vmem>>, vector<8x256xf32>
    %4 = vector.broadcast %1 : vector<8x1xf32> to vector<8x256xf32>
    %5 = arith.mulf %3, %4 : vector<8x256xf32>
    %6 = vector.broadcast %2 : vector<8x1xf32> to vector<8x256xf32>
    %7 = arith.addf %5, %6 : vector<8x256xf32>
    %c0_3 = arith.constant 0 : index
    %c0_4 = arith.constant 0 : index
    %8 = vector.load %arg4[%c0_3, %c0_4] : memref<8x256xf32, #tpu.memory_space<vmem>>, vector<8x256xf32>
    tpu.vector_store %arg4[%c0_3, %c0_4], %7 {strides = array<i32>} : memref<8x256xf32, #tpu.memory_space<vmem>>, vector<8x256xf32>,
    return
  }
  func.func @transform_0(%arg0: i32, %arg1: i32) -> (i32, i32) {
    %c0_i32 = arith.constant 0 : i32
    return %arg0, %arg1 : i32, i32
  }
  func.func @transform_1(%arg0: i32, %arg1: i32) -> (i32, i32) {
    %c0_i32 = arith.constant 0 : i32
    %c0_i32_0 = arith.constant 0 : i32
    return %arg0, %c0_i32 : i32, i32
  }
  func.func @transform_2(%arg0: i32, %arg1: i32) -> (i32, i32) {
    %c0_i32 = arith.constant 0 : i32
    return %arg0, %arg1 : i32, i32
  }
}

</mosaic_0001>

<llo_original>
// kernel: normalize_layer.1
$region0: #{normalize_layer.1}
  #allocation0 [shape = 'u32[]', space=smem, size = 0x4, offset = 0x4, fixed_abs, tag = 'smem constant byte address 0x4 - core index']
  #allocation1 [shape = 'u32[144,128]{1,0:T(1,128)}', space=vmem, size = 0x12000, scoped, tag = 'internal scratch']
  %s0 = inlined_call_operand.vmem [shape: f32[8,256], index: 0, kind: input, shape index: {}]
  %s1 = inlined_call_operand.vmem [shape: f32[8,2], index: 1, kind: input, shape index: {}]
  %s2 = inlined_call_operand.vmem [shape: f32[8,256], index: 2, kind: output, shape index: {}]
  %s3 = sld [smem:[#allocation0]]
  $region18: #{normalize_layer.1} parent=0
    _
  %s5 = ssub.s32 1, %s3
  %s6 = scalar_select 0, %s5, %s3
  // Predicated region
  $region2: #{normalize_layer.1} parent=0 // pred_check
    _
  $region3: #{normalize_layer.1} parent=0 // pred_check_branch
    %8 = sbr.rel (0) target = $region5
  $region4: #{normalize_layer.1} parent=0 // pred_region
    _
  $region5: #{normalize_layer.1} parent=0 // pred_fallthru
    _
  // Predicated region
  $region6: #{normalize_layer.1} parent=0 // pred_check
    _
  $region7: #{normalize_layer.1} parent=0 // pred_check_branch
    %10 = sbr.rel (0) target = $region9
  $region8: #{normalize_layer.1} parent=0 // pred_region
    _
  $region9: #{normalize_layer.1} parent=0 // pred_fallthru
    _
  %v11 = vld [vmem:[%s1] sm:$0xff]
  %v12 = vld [vmem:[%s0] sm:$0xff]
  %v13 = vld [vmem:[%s0 + $0x8] sm:$0xff]
  %15 = vset.pattern.permute.xlu0 0
  %16 = vperm.xlu0 %15, %v11
  %v17 = vpop.permute.xlu0 %16
  %v19 = vmul.f32 %v12, %v17
  %v20 = vmul.f32 %v13, %v17
  %21 = vset.pattern.permute.xlu0 1
  %22 = vperm.xlu0 %21, %v11
  %v23 = vpop.permute.xlu0 %22
  %v25 = vadd.f32 %v19, %v23
  %v26 = vadd.f32 %v20, %v23
  %27 = vst [vmem:[%s2] sm:$0xff] %v25
  %28 = vst [vmem:[%s2 + $0x8] sm:$0xff] %v26
  // Predicated region
  $region10: #{normalize_layer.1} parent=0 // pred_check
    _
  $region11: #{normalize_layer.1} parent=0 // pred_check_branch
    %30 = sbr.rel (0) target = $region13
  $region12: #{normalize_layer.1} parent=0 // pred_region
    _
  $region13: #{normalize_layer.1} parent=0 // pred_fallthru
    _
  // Predicated region
  $region14: #{normalize_layer.1} parent=0 // pred_check
    _
  $region15: #{normalize_layer.1} parent=0 // pred_check_branch
    %32 = sbr.rel (0) target = $region17
  $region16: #{normalize_layer.1} parent=0 // pred_region
    _
  $region17: #{normalize_layer.1} parent=0 // pred_fallthru
    _

</llo_original>
